<compile_context>
chip_gen: v7x
topology: tpu7x:2x2x1
jax: 0.10.0
libtpu: 0.0.40
codegen_flags: <defaults>
</compile_context>

<pallas_src>
import functools

import jax
import jax.numpy as jnp
from jax.experimental import pallas as pl
from jax.experimental.pallas import tpu as pltpu

ALPHA = 0.0       # CVDDNet.alpha (compile-time constant)
COS_EPS = 1e-8    # torch.nn.CosineSimilarity eps


# --------------------------------------------------------------------------- #
# Kernel
# --------------------------------------------------------------------------- #
def _cvdd_kernel(hidden_ref, w1_ref, w2_ref, c_ref, inv_cnorm_ref,
                 a_ref, cd_ref, *, s_valid):
    Bb, S, H = hidden_ref.shape          # batch slab, (padded) sequence, hidden
    Hd = w2_ref.shape[1]                 # n_attention_heads

    h = hidden_ref[...]                                  # (Bb, S, H) compute dtype
    h2d = h.reshape(Bb * S, H)

    # ---- SelfAttention: one big MXU pass per projection for the whole slab ----
    x = jnp.tanh(jnp.dot(h2d, w1_ref[...],
                         preferred_element_type=jnp.float32))          # (Bb*S, A) f32
    logits = jnp.dot(x.astype(w2_ref.dtype), w2_ref[...],
                     preferred_element_type=jnp.float32)               # (Bb*S, Hd) f32
    logits = logits.reshape(Bb, S, Hd)

    # Head-major BEFORE softmax: softmax over the sequence axis is now over the
    # last (lane) axis, so exp/sub/div run lane-dense instead of on Hd(~4) lanes.
    logits_t = jnp.swapaxes(logits, 1, 2)                              # (Bb, Hd, S)

    if s_valid < S:
        # Padded sequence positions (zero-padded hidden) -> force weight ~0.
        pos = jax.lax.broadcasted_iota(jnp.int32, (1, 1, S), 2)
        logits_t = jnp.where(pos < s_valid, logits_t, jnp.float32(-1e30))

    lmax = jnp.max(logits_t, axis=-1, keepdims=True)
    e = jnp.exp(logits_t - lmax)
    attn = e / jnp.sum(e, axis=-1, keepdims=True)                      # (Bb, Hd, S) f32

    # Store A directly from the head-major tensor (lane axis = S).
    a_ref[...] = attn.astype(a_ref.dtype)

    # M = A @ hidden, batched over the slab (f32 accumulation on the MXU).
    M = jnp.einsum("bds,bsh->bdh", attn.astype(h.dtype), h,
                   preferred_element_type=jnp.float32)                 # (Bb, Hd, H)

    # ---- cosine distance to contexts (torch dim=2 -> last axis), all f32 ----
    c = c_ref[...].astype(jnp.float32)                                 # (Hd, H)
    num = jnp.sum(M * c[None], axis=2)                                 # (Bb, Hd)
    nm = jnp.sqrt(jnp.sum(M * M, axis=2))                              # (Bb, Hd)
    cos = (num / jnp.maximum(nm, COS_EPS)) * inv_cnorm_ref[...]        # (1,Hd) hoisted
    cd_ref[0] = (0.5 * (1.0 - cos)).astype(cd_ref.dtype)


# --------------------------------------------------------------------------- #
# Block-size selection helpers
# --------------------------------------------------------------------------- #
def _vmem_budget_bytes():
    """Per-generation VMEM budget (half of physical capacity as headroom)."""
    try:
        info = pltpu.get_tpu_info()
        cap = getattr(info, "vmem_capacity_bytes", None)
        if cap:
            return int(cap) // 2
    except Exception:  # pragma: no cover - defensive (non-TPU / API drift)
        pass
    return 32 * 1024 * 1024


def _per_batch_vmem_bytes(S, H, A, Hd, in_itemsize, out_itemsize):
    """Approximate VMEM bytes needed per batch element inside one grid step."""
    # Double-buffered streamed I/O (hidden slab in, A / cd slabs out).
    stream = 2 * (S * H * in_itemsize + Hd * S * out_itemsize + Hd * 4)
    # f32 intermediates (x, logits, head-major logits + attn, M).
    interm = 4 * (S * A + S * Hd + 2 * Hd * S + Hd * H)
    return stream + interm


def _choose_num_blocks(B, per_batch_bytes, fixed_bytes, budget):
    divisors = sorted(d for d in range(1, B + 1) if B % d == 0)
    nb = B  # fallback: one batch element per step
    for d in divisors:
        if fixed_bytes + (B // d) * per_batch_bytes <= budget:
            nb = d
            break
    # Give the pipeline (and v7x's 2 TensorCores) something to overlap:
    # at least min(4, B) grid steps, as long as B_blk stays >= 1.
    min_steps = min(4, B)
    if nb < min_steps:
        nb = next(d for d in divisors if d >= min_steps)
    return nb


# --------------------------------------------------------------------------- #
# Wrapper
# --------------------------------------------------------------------------- #
def cvdd_forward(hidden_bsh, w1, w2, c, *, compute_dtype=jnp.float32,
                 num_blocks=None):
    """CVDDNet.forward given pretrained-model hidden states.

    hidden_bsh: (B, S, H)  -- hidden.transpose(0, 1) in the PyTorch module
    w1:         (H, A)     == W1.weight.T
    w2:         (A, Hd)    == W2.weight.T
    c:          (Hd, H)    == self.c squeezed
    Returns (cosine_dists (B, Hd), context_weights (B, Hd), A (B, Hd, S)).
    """
    B, S, H = hidden_bsh.shape
    A_sz = w1.shape[1]
    Hd = w2.shape[1]

    # Pad S to a multiple of 8 sublanes so in-kernel reshapes stay view-like
    # and the A store stays unmasked. (Padded logits are masked in-kernel.)
    S_pad = ((S + 7) // 8) * 8
    if S_pad != S:
        hidden_bsh = jnp.pad(hidden_bsh, ((0, 0), (0, S_pad - S), (0, 0)))

    # Cast streamed / MXU operands; keep cosine math inputs in f32.
    hidden_in = hidden_bsh.astype(compute_dtype)
    w1_in = w1.astype(compute_dtype)
    w2_in = w2.astype(compute_dtype)
    c_f32 = c.astype(jnp.float32)

    in_b = jnp.dtype(compute_dtype).itemsize
    out_b = in_b

    # VMEM-derived grid sizing.
    budget = _vmem_budget_bytes()
    per_batch = _per_batch_vmem_bytes(S_pad, H, A_sz, Hd, in_b, out_b)
    fixed = 2 * ((H * A_sz + A_sz * Hd) * in_b + Hd * H * 4 + Hd * 4)   # resident weights
    if num_blocks is None:
        num_blocks = _choose_num_blocks(B, per_batch, fixed, budget)
    assert B % num_blocks == 0, "batch must divide evenly into grid blocks"
    B_blk = B // num_blocks
    vmem_limit = int(min(budget,
                         max(32 * 1024 * 1024,
                             fixed + B_blk * per_batch + (4 << 20))))

    # Batch-invariant context-norm reciprocal, hoisted out of the kernel.
    inv_cnorm = (1.0 / jnp.maximum(jnp.sqrt(jnp.sum(c_f32 * c_f32, axis=1)),
                                   COS_EPS))[None, :]                   # (1, Hd)

    out_shape = (
        jax.ShapeDtypeStruct((B, Hd, S_pad), compute_dtype),            # A
        jax.ShapeDtypeStruct((num_blocks, B_blk, Hd), jnp.float32),     # cosine_dists
    )

    # Advisory cost estimate so XLA can schedule around the custom call.
    flops = int(2 * B * S_pad * H * A_sz          # W1
                + 2 * B * S_pad * A_sz * Hd       # W2
                + 2 * B * Hd * S_pad * H          # M = A @ hidden
                + 6 * B * Hd * H)                 # cosine reductions
    transcendentals = int(B * S_pad * A_sz + B * Hd * S_pad)   # tanh + exp
    bytes_accessed = int(B * S_pad * H * in_b
                         + (H * A_sz + A_sz * Hd) * in_b + Hd * H * 4 + Hd * 4
                         + B * Hd * S_pad * out_b + B * Hd * 4)

    kernel = functools.partial(_cvdd_kernel, s_valid=S)

    A_out, cd = pl.pallas_call(
        kernel,
        out_shape=out_shape,
        grid_spec=pltpu.PrefetchScalarGridSpec(
            num_scalar_prefetch=0,
            grid=(num_blocks,),
            in_specs=[
                pl.BlockSpec((B_blk, S_pad, H), lambda g: (g, 0, 0)),
                # weights/contexts: constant index maps -> fetched once, stay resident
                pl.BlockSpec((H, A_sz), lambda g: (0, 0)),
                pl.BlockSpec((A_sz, Hd), lambda g: (0, 0)),
                pl.BlockSpec((Hd, H), lambda g: (0, 0)),
                pl.BlockSpec((1, Hd), lambda g: (0, 0)),
            ],
            out_specs=[
                pl.BlockSpec((B_blk, Hd, S_pad), lambda g: (g, 0, 0)),
                pl.BlockSpec((1, B_blk, Hd), lambda g: (g, 0, 0)),
            ],
        ),
        compiler_params=pltpu.CompilerParams(
            dimension_semantics=("parallel",),      # batch blocks shard across v7x's 2 TCs
            vmem_limit_bytes=vmem_limit,
        ),
        cost_estimate=pl.CostEstimate(flops=flops,
                                      transcendentals=transcendentals,
                                      bytes_accessed=bytes_accessed),
    )(hidden_in, w1_in, w2_in, c_f32, inv_cnorm)

    cd = cd.reshape(B, Hd)
    if S_pad != S:
        A_out = A_out[:, :, :S]

    # context_weights are input-independent for alpha == 0 -> produced in the
    # wrapper (exact 1/Hd); general path uses the cd kernel output.
    if ALPHA == 0.0:
        cw = jnp.full((B, Hd), 1.0 / Hd, dtype=cd.dtype)
    else:
        cw = jax.nn.softmax(-ALPHA * cd, axis=1)

    # (B, Hd), (B, Hd), (B, Hd, S) -- matches PyTorch CVDDNet.forward outputs
    return cd, cw, A_out


# --------------------------------------------------------------------------- #
# Pure-JAX reference (for correctness checks)
# --------------------------------------------------------------------------- #
def reference_forward(hidden_bsh, w1, w2, c):
    x = jnp.tanh(jnp.einsum("bsh,ha->bsa", hidden_bsh, w1))
    logits = jnp.einsum("bsa,ad->bsd", x, w2)
    attn = jax.nn.softmax(logits, axis=1)                     # over seq
    A = jnp.swapaxes(attn, 1, 2)                              # (B, Hd, S)
    M = jnp.einsum("bds,bsh->bdh", A, hidden_bsh)             # (B, Hd, H)
    cb = c[None]                                              # (1, Hd, H)
    num = jnp.sum(M * cb, axis=2)
    nm = jnp.linalg.norm(M, axis=2)
    nc = jnp.linalg.norm(cb, axis=2)
    cos = num / (jnp.maximum(nm, COS_EPS) * jnp.maximum(nc, COS_EPS))
    cd = 0.5 * (1.0 - cos)                                    # (B, Hd)
    cw = jax.nn.softmax(-ALPHA * cd, axis=1)
    return cd, cw, A


if __name__ == "__main__":
    # Small, deterministic synthetic setup.
    B, S = 8, 8            # batch, sequence length
    H = 32                 # pretrained_model.embedding_size
    ATTN = 32              # attention_size
    HEADS = 4              # n_attention_heads
    VOCAB = 50

    key = jax.random.PRNGKey(0)
    k_emb, k_tok, k_w1, k_w2, k_c = jax.random.split(key, 5)

    # pretrained_model: simple word-embedding lookup (plain-JAX glue, outside kernel)
    emb_table = jax.random.normal(k_emb, (VOCAB, H), jnp.float32) * 0.1
    x_tokens = jax.random.randint(k_tok, (S, B), 0, VOCAB)     # (S, B) like torch

    hidden = emb_table[x_tokens]                               # (S, B, H)
    hidden_bsh = jnp.swapaxes(hidden, 0, 1)                    # transpose(0, 1)

    # SelfAttention params (bias-free Linear layers), stored pre-transposed.
    w1 = jax.random.normal(k_w1, (H, ATTN), jnp.float32) * 0.1      # W1.weight.T
    w2 = jax.random.normal(k_w2, (ATTN, HEADS), jnp.float32) * 0.1  # W2.weight.T
    # c = (rand(1, heads, H) - 0.5) * 2  -> uniform in [-1, 1)
    c = jax.random.uniform(k_c, (HEADS, H), jnp.float32, -1.0, 1.0)

    cd, cw, A = jax.block_until_ready(cvdd_forward(hidden_bsh, w1, w2, c))
    cd_ref, cw_ref, A_ref = reference_forward(hidden_bsh, w1, w2, c)

    assert cd.shape == (B, HEADS) and cw.shape == (B, HEADS) and A.shape == (B, HEADS, S)
    assert jnp.allclose(cd, cd_ref, atol=1e-5), "cosine_dists mismatch"
    assert jnp.allclose(cw, cw_ref, atol=1e-5), "context_weights mismatch"
    assert jnp.allclose(A, A_ref, atol=1e-5), "attention matrix mismatch"

    print("KERNEL_OK")
</pallas_src>

<mosaic_0001>
module attributes {stable_mosaic.version = 11 : i64} {
  func.func @_cvdd_kernel(%arg0: i32, %arg1: memref<2x8x32xf32, #tpu.memory_space<vmem>>, %arg2: memref<32x32xf32, #tpu.memory_space<vmem>>, %arg3: memref<32x4xf32, #tpu.memory_space<vmem>>, %arg4: memref<4x32xf32, #tpu.memory_space<vmem>>, %arg5: memref<1x4xf32, #tpu.memory_space<vmem>>, %arg6: memref<2x4x8xf32, #tpu.memory_space<vmem>>, %arg7: memref<1x2x4xf32, #tpu.memory_space<vmem>>) attributes {dimension_semantics = [#tpu.dimension_semantics<parallel>], iteration_bounds = array<i64: 4>, scalar_prefetch = 0 : i64, scratch_operands = 0 : i64, tpu.core_type = #tpu.core_type<tc>, window_params = [{transform_indices = @transform_0, window_bounds = array<i64: 2, 8, 32>}, {pipeline_mode = #tpu.pipeline_mode<synchronous>, transform_indices = @transform_1, window_bounds = array<i64: 32, 32>}, {pipeline_mode = #tpu.pipeline_mode<synchronous>, transform_indices = @transform_2, window_bounds = array<i64: 32, 4>}, {pipeline_mode = #tpu.pipeline_mode<synchronous>, transform_indices = @transform_3, window_bounds = array<i64: 4, 32>}, {pipeline_mode = #tpu.pipeline_mode<synchronous>, transform_indices = @transform_4, window_bounds = array<i64: 1, 4>}, {transform_indices = @transform_5, window_bounds = array<i64: 2, 4, 8>}, {transform_indices = @transform_6, window_bounds = array<i64: 1, 2, 4>}]} {
    %c0 = arith.constant 0 : index
    %c0_0 = arith.constant 0 : index
    %c0_1 = arith.constant 0 : index
    %0 = vector.load %arg1[%c0, %c0_0, %c0_1] : memref<2x8x32xf32, #tpu.memory_space<vmem>>, vector<2x8x32xf32>
    %1 = vector.shape_cast %0 : vector<2x8x32xf32> to vector<16x32xf32>
    %c0_2 = arith.constant 0 : index
    %c0_3 = arith.constant 0 : index
    %2 = vector.load %arg2[%c0_2, %c0_3] : memref<32x32xf32, #tpu.memory_space<vmem>>, vector<32x32xf32>
    %cst = arith.constant dense<0.000000e+00> : vector<16x32xf32>
    %3 = tpu.matmul %1, %2, %cst {dimension_numbers = #tpu.dot_dimension_numbers<[1], [0], [0], [1], [0, 0, 1, 1], [], []>} : vector<16x32xf32>, vector<32x32xf32>, vector<16x32xf32> -> vector<16x32xf32>
    %4 = math.tanh %3 : vector<16x32xf32>
    %c0_4 = arith.constant 0 : index
    %c0_5 = arith.constant 0 : index
    %5 = vector.load %arg3[%c0_4, %c0_5] : memref<32x4xf32, #tpu.memory_space<vmem>>, vector<32x4xf32>
    %cst_6 = arith.constant dense<0.000000e+00> : vector<16x4xf32>
    %6 = tpu.matmul %4, %5, %cst_6 {dimension_numbers = #tpu.dot_dimension_numbers<[1], [0], [0], [1], [0, 0, 1, 1], [], []>} : vector<16x32xf32>, vector<32x4xf32>, vector<16x4xf32> -> vector<16x4xf32>
    %7 = vector.shape_cast %6 : vector<16x4xf32> to vector<2x8x4xf32>
    %8 = tpu.transpose %7, [0, 2, 1] : vector<2x8x4xf32> -> vector<2x4x8xf32>
    %cst_7 = arith.constant dense<0xFF800000> : vector<2x4xf32>
    %9 = vector.multi_reduction <maximumf>, %8, %cst_7 [2] : vector<2x4x8xf32> to vector<2x4xf32>
    %10 = vector.shape_cast %9 : vector<2x4xf32> to vector<2x4x1xf32>
    %11 = vector.broadcast %10 : vector<2x4x1xf32> to vector<2x4x8xf32>
    %12 = arith.subf %8, %11 : vector<2x4x8xf32>
    %13 = math.exp %12 : vector<2x4x8xf32>
    %cst_8 = arith.constant dense<0.000000e+00> : vector<2x4xf32>
    %14 = vector.multi_reduction <add>, %13, %cst_8 [2] : vector<2x4x8xf32> to vector<2x4xf32>
    %15 = vector.shape_cast %14 : vector<2x4xf32> to vector<2x4x1xf32>
    %16 = vector.broadcast %15 : vector<2x4x1xf32> to vector<2x4x8xf32>
    %17 = arith.divf %13, %16 : vector<2x4x8xf32>
    %c0_9 = arith.constant 0 : index
    %c0_10 = arith.constant 0 : index
    %c0_11 = arith.constant 0 : index
    %18 = vector.load %arg6[%c0_9, %c0_10, %c0_11] : memref<2x4x8xf32, #tpu.memory_space<vmem>>, vector<2x4x8xf32>
    tpu.vector_store %arg6[%c0_9, %c0_10, %c0_11], %17 {strides = array<i32>} : memref<2x4x8xf32, #tpu.memory_space<vmem>>, vector<2x4x8xf32>,
    "tpu.trace_start"() <{level = 10 : i32, message = "bds,bsh->bdh"}> : () -> ()
    %cst_12 = arith.constant dense<0.000000e+00> : vector<2x4x32xf32>
    %19 = tpu.matmul %17, %0, %cst_12 {dimension_numbers = #tpu.dot_dimension_numbers<[2], [1], [1], [2], [0, 0, 0, 1, 1, 2], [0], [0]>} : vector<2x4x8xf32>, vector<2x8x32xf32>, vector<2x4x32xf32> -> vector<2x4x32xf32>
    "tpu.trace_stop"() : () -> ()
    %c0_13 = arith.constant 0 : index
    %c0_14 = arith.constant 0 : index
    %20 = vector.load %arg4[%c0_13, %c0_14] : memref<4x32xf32, #tpu.memory_space<vmem>>, vector<4x32xf32>
    %21 = vector.shape_cast %20 : vector<4x32xf32> to vector<1x4x32xf32>
    %22 = vector.broadcast %21 : vector<1x4x32xf32> to vector<2x4x32xf32>
    %23 = arith.mulf %19, %22 : vector<2x4x32xf32>
    %cst_15 = arith.constant dense<0.000000e+00> : vector<2x4xf32>
    %24 = vector.multi_reduction <add>, %23, %cst_15 [2] : vector<2x4x32xf32> to vector<2x4xf32>
    %25 = arith.mulf %19, %19 : vector<2x4x32xf32>
    %cst_16 = arith.constant dense<0.000000e+00> : vector<2x4xf32>
    %26 = vector.multi_reduction <add>, %25, %cst_16 [2] : vector<2x4x32xf32> to vector<2x4xf32>
    %27 = math.sqrt %26 : vector<2x4xf32>
    %cst_17 = arith.constant 9.99999993E-9 : f32
    %28 = vector.broadcast %cst_17 : f32 to vector<2x4xf32>
    %29 = arith.maximumf %27, %28 : vector<2x4xf32>
    %30 = arith.divf %24, %29 : vector<2x4xf32>
    %c0_18 = arith.constant 0 : index
    %c0_19 = arith.constant 0 : index
    %31 = vector.load %arg5[%c0_18, %c0_19] : memref<1x4xf32, #tpu.memory_space<vmem>>, vector<1x4xf32>
    %32 = vector.broadcast %31 : vector<1x4xf32> to vector<2x4xf32>
    %33 = arith.mulf %30, %32 : vector<2x4xf32>
    %cst_20 = arith.constant 1.000000e+00 : f32
    %34 = vector.broadcast %cst_20 : f32 to vector<2x4xf32>
    %35 = arith.subf %34, %33 : vector<2x4xf32>
    %cst_21 = arith.constant 5.000000e-01 : f32
    %36 = vector.broadcast %cst_21 : f32 to vector<2x4xf32>
    %37 = arith.mulf %36, %35 : vector<2x4xf32>
    %c0_22 = arith.constant 0 : index
    %c0_23 = arith.constant 0 : index
    %c0_24 = arith.constant 0 : index
    %38 = vector.load %arg7[%c0_22, %c0_23, %c0_24] : memref<1x2x4xf32, #tpu.memory_space<vmem>>, vector<1x2x4xf32>
    %39 = vector.shape_cast %38 : vector<1x2x4xf32> to vector<2x4xf32>
    %40 = vector.shape_cast %37 : vector<2x4xf32> to vector<1x2x4xf32>
    tpu.vector_store %arg7[%c0_22, %c0_23, %c0_24], %40 {strides = array<i32>} : memref<1x2x4xf32, #tpu.memory_space<vmem>>, vector<1x2x4xf32>,
    return
  }
  func.func @transform_0(%arg0: i32) -> (i32, i32, i32) {
    %c0_i32 = arith.constant 0 : i32
    %c0_i32_0 = arith.constant 0 : i32
    %c0_i32_1 = arith.constant 0 : i32
    return %arg0, %c0_i32, %c0_i32_0 : i32, i32, i32
  }
  func.func @transform_1(%arg0: i32) -> (i32, i32) {
    %c0_i32 = arith.constant 0 : i32
    %c0_i32_0 = arith.constant 0 : i32
    %c0_i32_1 = arith.constant 0 : i32
    return %c0_i32, %c0_i32_0 : i32, i32
  }
  func.func @transform_2(%arg0: i32) -> (i32, i32) {
    %c0_i32 = arith.constant 0 : i32
    %c0_i32_0 = arith.constant 0 : i32
    %c0_i32_1 = arith.constant 0 : i32
    return %c0_i32, %c0_i32_0 : i32, i32
  }
  func.func @transform_3(%arg0: i32) -> (i32, i32) {
    %c0_i32 = arith.constant 0 : i32
    %c0_i32_0 = arith.constant 0 : i32
    %c0_i32_1 = arith.constant 0 : i32
    return %c0_i32, %c0_i32_0 : i32, i32
  }
  func.func @transform_4(%arg0: i32) -> (i32, i32) {
    %c0_i32 = arith.constant 0 : i32
    %c0_i32_0 = arith.constant 0 : i32
    %c0_i32_1 = arith.constant 0 : i32
    return %c0_i32, %c0_i32_0 : i32, i32
  }
  func.func @transform_5(%arg0: i32) -> (i32, i32, i32) {
    %c0_i32 = arith.constant 0 : i32
    %c0_i32_0 = arith.constant 0 : i32
    %c0_i32_1 = arith.constant 0 : i32
    return %arg0, %c0_i32, %c0_i32_0 : i32, i32, i32
  }
  func.func @transform_6(%arg0: i32) -> (i32, i32, i32) {
    %c0_i32 = arith.constant 0 : i32
    %c0_i32_0 = arith.constant 0 : i32
    %c0_i32_1 = arith.constant 0 : i32
    return %arg0, %c0_i32, %c0_i32_0 : i32, i32, i32
  }
}

</mosaic_0001>

<llo_original>
// kernel: tpu_custom_call.1
$region0: #{tpu_custom_call.1}
  #allocation0 [shape = 'u32[]', space=smem, size = 0x4, offset = 0x4, fixed_abs, tag = 'smem constant byte address 0x4 - core index']
  #allocation1 [shape = 'u32[144,128]{1,0:T(1,128)}', space=vmem, size = 0x12000, scoped, tag = 'internal scratch']
  %s0 = inlined_call_operand.hbm [shape: f32[8,8,32], index: 0, kind: input, shape index: {}]
  %s1 = inlined_call_operand.vmem [shape: f32[32,32], index: 1, kind: input, shape index: {}]
  %s2 = inlined_call_operand.vmem [shape: f32[32,4], index: 2, kind: input, shape index: {}]
  %s3 = inlined_call_operand.vmem [shape: f32[4,32], index: 3, kind: input, shape index: {}]
  %s4 = inlined_call_operand.vmem [shape: f32[1,4], index: 4, kind: input, shape index: {}]
  %s5 = inlined_call_operand.hbm [shape: f32[8,4,8], index: 5, kind: output, shape index: {0}]
  %s6 = inlined_call_operand.hbm [shape: f32[4,2,4], index: 6, kind: output, shape index: {1}]
  %7 = xla_tuple %s5, %s6
  %s8 = sld [smem:[#allocation0]]
  $region65: #{tpu_custom_call.1} parent=0
    _
  %s10 = ssub.s32 1, %s8
  %s11 = scalar_select 0, %s10, %s8
  $region1: #{tpu_custom_call.1} parent=0
    #allocation2 [shape = 'u8[16384]{0}', space=vmem, size = 0x4000, scoped, tag = 'input window, operand 0']
    #allocation3 [shape = 's32[2]{0}', space=sflag, size = 0x8, scoped, tag = 'scoped memory for tpu_custom_call.1']
    #allocation4 [shape = 's32[2]{0}', space=sflag, size = 0x8, scoped, tag = 'scoped memory for tpu_custom_call.1']
    #allocation5 [shape = 'u8[8192]{0}', space=vmem, size = 0x2000, scoped, tag = 'output window, operand 0']
    #allocation6 [shape = 'u8[2048]{0}', space=vmem, size = 0x800, scoped, tag = 'output window, operand 1']
    #allocation7 [shape = 's32[2]{0}', space=sflag, size = 0x8, scoped, tag = 'scoped memory for tpu_custom_call.1']
    %12 = vsyncpa [#allocation3], 0
    %s13 = scalar_lea.sflag [#allocation3], 1
    %14 = vsyncpa %s13, 0
    %15 = vsyncpa [#allocation4], 0
    %s16 = scalar_lea.sflag [#allocation4], 1
    %17 = vsyncpa %s16, 0
    %18 = vsyncpa [#allocation7], 0
    %s19 = scalar_lea.sflag [#allocation7], 1
    %20 = vsyncpa %s19, 0
    loop: start=0, step=1, limit=6
    $region2: #{tpu_custom_call.1} parent=1 // loop_pre_header
      _
    $region3: #{tpu_custom_call.1} parent=1 // loop_header
      %s22 = sphi 0, %s26
      %p23 = scmp.ge.s32.totalorder %s22, 6
      %s32 = sphi 0, %s34
      %s35 = sphi 0, %s32
      %s36 = sphi 0, %s35
      %s52 = sphi 0, %s36
      %s56 = sphi 0, %s56
      %s58 = sphi 0, %s56
      %s59 = sphi 0, %s58
      %s73 = sphi 0, %s59
      %s77 = sphi 0, %s77
      %s79 = sphi 0, %s77
      %s80 = sphi 0, %s79
      %s94 = sphi 0, %s80
      %s98 = sphi 0, %s98
      %s100 = sphi 0, %s98
      %s101 = sphi 0, %s100
      %s115 = sphi 0, %s101
      %s119 = sphi 0, %s119
      %s121 = sphi 0, %s119
      %s122 = sphi 0, %s121
      %s136 = sphi 0, %s122
      %s142 = sphi 0, %s144
      %s145 = sphi 0, %s142
      %s146 = sphi 0, %s145
      %s162 = sphi 0, %s146
      %s168 = sphi 0, %s170
      %s171 = sphi 0, %s168
      %s172 = sphi 0, %s171
      %s188 = sphi 0, %s172
    $region4: #{tpu_custom_call.1} parent=1 // loop_header_branch
      %25 = sbr.rel (%p23) target = $region8
    $region5: #{tpu_custom_call.1} parent=1 // loop_body
      %s27 = ssub.s32 %s22, 1
      %s28 = ssub.s32 %s22, 2
      %s29 = sadd.s32 %s22, 1
      %s30 = ssub.s32 %s22, %s29
      %p31 = scmp.eq.s32.totalorder %s30, 0
      %s33 = sadd.s32 %s32, 1
      %s34 = scalar_select %p31, %s32, %s33
      %p37 = pneg %p31
      %p38 = scmp.eq.s32.totalorder %s22, 3
      %p39 = por %p37, %p38
      %p40 = scmp.ne.s32.totalorder %s32, %s35
      %p41 = scmp.eq.s32.totalorder %s22, 0
      %p42 = por %p40, %p41
      %p43 = scmp.ne.s32.totalorder %s32, %s35
      %p44 = scmp.eq.s32.totalorder %s27, 3
      %p45 = por %p43, %p44
      %p46 = scmp.ne.s32.totalorder %s35, %s36
      %p47 = scmp.eq.s32.totalorder %s27, 0
      %p48 = por %p46, %p47
      %p49 = scmp.ne.s32.totalorder %s35, %s36
      %p50 = scmp.eq.s32.totalorder %s28, 3
      %p51 = por %p49, %p50
      %p53 = scmp.ne.s32.totalorder %s36, %s52
      %p54 = scmp.eq.s32.totalorder %s28, 0
      %p55 = por %p53, %p54
      %s57 = sadd.s32 %s56, 1
      %p60 = scmp.eq.s32.totalorder %s22, 3
      %p61 = scmp.ne.s32.totalorder %s56, %s58
      %p62 = scmp.eq.s32.totalorder %s22, 0
      %p63 = por %p61, %p62
      %p64 = scmp.ne.s32.totalorder %s56, %s58
      %p65 = scmp.eq.s32.totalorder %s27, 3
      %p66 = por %p64, %p65
      %p67 = scmp.ne.s32.totalorder %s58, %s59
      %p68 = scmp.eq.s32.totalorder %s27, 0
      %p69 = por %p67, %p68
      %p70 = scmp.ne.s32.totalorder %s58, %s59
      %p71 = scmp.eq.s32.totalorder %s28, 3
      %p72 = por %p70, %p71
      %p74 = scmp.ne.s32.totalorder %s59, %s73
      %p75 = scmp.eq.s32.totalorder %s28, 0
      %p76 = por %p74, %p75
      %s78 = sadd.s32 %s77, 1
      %p81 = scmp.eq.s32.totalorder %s22, 3
      %p82 = scmp.ne.s32.totalorder %s77, %s79
      %p83 = scmp.eq.s32.totalorder %s22, 0
      %p84 = por %p82, %p83
      %p85 = scmp.ne.s32.totalorder %s77, %s79
      %p86 = scmp.eq.s32.totalorder %s27, 3
      %p87 = por %p85, %p86
      %p88 = scmp.ne.s32.totalorder %s79, %s80
      %p89 = scmp.eq.s32.totalorder %s27, 0
      %p90 = por %p88, %p89
      %p91 = scmp.ne.s32.totalorder %s79, %s80
      %p92 = scmp.eq.s32.totalorder %s28, 3
      %p93 = por %p91, %p92
      %p95 = scmp.ne.s32.totalorder %s80, %s94
      %p96 = scmp.eq.s32.totalorder %s28, 0
      %p97 = por %p95, %p96
      %s99 = sadd.s32 %s98, 1
      %p102 = scmp.eq.s32.totalorder %s22, 3
      %p103 = scmp.ne.s32.totalorder %s98, %s100
      %p104 = scmp.eq.s32.totalorder %s22, 0
      %p105 = por %p103, %p104
      %p106 = scmp.ne.s32.totalorder %s98, %s100
      %p107 = scmp.eq.s32.totalorder %s27, 3
      %p108 = por %p106, %p107
      %p109 = scmp.ne.s32.totalorder %s100, %s101
      %p110 = scmp.eq.s32.totalorder %s27, 0
      %p111 = por %p109, %p110
      %p112 = scmp.ne.s32.totalorder %s100, %s101
      %p113 = scmp.eq.s32.totalorder %s28, 3
      %p114 = por %p112, %p113
      %p116 = scmp.ne.s32.totalorder %s101, %s115
      %p117 = scmp.eq.s32.totalorder %s28, 0
      %p118 = por %p116, %p117
      %s120 = sadd.s32 %s119, 1
      %p123 = scmp.eq.s32.totalorder %s22, 3
      %p124 = scmp.ne.s32.totalorder %s119, %s121
      %p125 = scmp.eq.s32.totalorder %s22, 0
      %p126 = por %p124, %p125
      %p127 = scmp.ne.s32.totalorder %s119, %s121
      %p128 = scmp.eq.s32.totalorder %s27, 3
      %p129 = por %p127, %p128
      %p130 = scmp.ne.s32.totalorder %s121, %s122
      %p131 = scmp.eq.s32.totalorder %s27, 0
      %p132 = por %p130, %p131
      %p133 = scmp.ne.s32.totalorder %s121, %s122
      %p134 = scmp.eq.s32.totalorder %s28, 3
      %p135 = por %p133, %p134
      %p137 = scmp.ne.s32.totalorder %s122, %s136
      %p138 = scmp.eq.s32.totalorder %s28, 0
      %p139 = por %p137, %p138
      %s140 = ssub.s32 %s22, %s29
      %p141 = scmp.eq.s32.totalorder %s140, 0
      %s143 = sadd.s32 %s142, 1
      %s144 = scalar_select %p141, %s142, %s143
      %p147 = pneg %p141
      %p148 = scmp.eq.s32.totalorder %s22, 3
      %p149 = por %p147, %p148
      %p150 = scmp.ne.s32.totalorder %s142, %s145
      %p151 = scmp.eq.s32.totalorder %s22, 0
      %p152 = por %p150, %p151
      %p153 = scmp.ne.s32.totalorder %s142, %s145
      %p154 = scmp.eq.s32.totalorder %s27, 3
      %p155 = por %p153, %p154
      %p156 = scmp.ne.s32.totalorder %s145, %s146
      %p157 = scmp.eq.s32.totalorder %s27, 0
      %p158 = por %p156, %p157
      %p159 = scmp.ne.s32.totalorder %s145, %s146
      %p160 = scmp.eq.s32.totalorder %s28, 3
      %p161 = por %p159, %p160
      %p163 = scmp.ne.s32.totalorder %s146, %s162
      %p164 = scmp.eq.s32.totalorder %s28, 0
      %p165 = por %p163, %p164
      %s166 = ssub.s32 %s22, %s29
      %p167 = scmp.eq.s32.totalorder %s166, 0
      %s169 = sadd.s32 %s168, 1
      %s170 = scalar_select %p167, %s168, %s169
      %p173 = pneg %p167
      %p174 = scmp.eq.s32.totalorder %s22, 3
      %p175 = por %p173, %p174
      %p176 = scmp.ne.s32.totalorder %s168, %s171
      %p177 = scmp.eq.s32.totalorder %s22, 0
      %p178 = por %p176, %p177
      %p179 = scmp.ne.s32.totalorder %s168, %s171
      %p180 = scmp.eq.s32.totalorder %s27, 3
      %p181 = por %p179, %p180
      %p182 = scmp.ne.s32.totalorder %s171, %s172
      %p183 = scmp.eq.s32.totalorder %s27, 0
      %p184 = por %p182, %p183
      %p185 = scmp.ne.s32.totalorder %s171, %s172
      %p186 = scmp.eq.s32.totalorder %s28, 3
      %p187 = por %p185, %p186
      %p189 = scmp.ne.s32.totalorder %s172, %s188
      %p190 = scmp.eq.s32.totalorder %s28, 0
      %p191 = por %p189, %p190
      %p192 = scmp.le.s32.totalorder 1, %s22
      %p193 = scmp.lt.s32.totalorder %s22, 5
      %p194 = pnand %p192, %p193
      %p195 = pneg %p194
      // Predicated region
      $region9: #{tpu_custom_call.1} parent=5 // pred_check
        _
      $region10: #{tpu_custom_call.1} parent=5 // pred_check_branch
        %197 = sbr.rel (%p194) target = $region12
      $region11: #{tpu_custom_call.1} parent=5 // pred_region
        %s198 = ssub.s32 %s22, 1
        // Predicated region
        $region13: #{tpu_custom_call.1} parent=11 // pred_check
          %p199 = pneg %p69
        $region14: #{tpu_custom_call.1} parent=11 // pred_check_branch
          %201 = sbr.rel (%p199) target = $region16
        $region15: #{tpu_custom_call.1} parent=11 // pred_region
          _
        $region16: #{tpu_custom_call.1} parent=11 // pred_fallthru
          _
        // Predicated region
        $region17: #{tpu_custom_call.1} parent=11 // pred_check
          %p202 = pneg %p90
        $region18: #{tpu_custom_call.1} parent=11 // pred_check_branch
          %204 = sbr.rel (%p202) target = $region20
        $region19: #{tpu_custom_call.1} parent=11 // pred_region
          _
        $region20: #{tpu_custom_call.1} parent=11 // pred_fallthru
          _
        // Predicated region
        $region21: #{tpu_custom_call.1} parent=11 // pred_check
          %p205 = pneg %p111
        $region22: #{tpu_custom_call.1} parent=11 // pred_check_branch
          %207 = sbr.rel (%p205) target = $region24
        $region23: #{tpu_custom_call.1} parent=11 // pred_region
          _
        $region24: #{tpu_custom_call.1} parent=11 // pred_fallthru
          _
        // Predicated region
        $region25: #{tpu_custom_call.1} parent=11 // pred_check
          %p208 = pneg %p132
        $region26: #{tpu_custom_call.1} parent=11 // pred_check_branch
          %210 = sbr.rel (%p208) target = $region28
        $region27: #{tpu_custom_call.1} parent=11 // pred_region
          _
        $region28: #{tpu_custom_call.1} parent=11 // pred_fallthru
          _
      $region12: #{tpu_custom_call.1} parent=5 // pred_fallthru
        _
      %p211 = scmp.lt.s32.totalorder %s22, 4
      // Predicated region
      $region29: #{tpu_custom_call.1} parent=5 // pred_check
        %p212 = pneg %p211
      $region30: #{tpu_custom_call.1} parent=5 // pred_check_branch
        %214 = sbr.rel (%p212) target = $region32
      $region31: #{tpu_custom_call.1} parent=5 // pred_region
        // Predicated region
        $region33: #{tpu_custom_call.1} parent=31 // pred_check
          %p215 = pneg %p42
        $region34: #{tpu_custom_call.1} parent=31 // pred_check_branch
          %217 = sbr.rel (%p215) target = $region36
        $region35: #{tpu_custom_call.1} parent=31 // pred_region
          %s218 = sand.u32 %s32, 1
          %s219 = scalar_lea.sflag [#allocation3], %s218
          %s220 = sand.u32 %s32, 1
          %s221 = smul.addr %s220, 16
          %s222 = scalar_lea.vmem [#allocation2], %s221
          %s223 = smul.u32 2, %s22
          %s225 = ssub.s32 256, 256
          %226 = vsyncadd %s219, %s225
          %s227 = smul.addr %s223, 128
          %s228 = scalar_lea.hbm %s0, %s227
          %s229 = sshll.u32 %s222, 4
          %s230 = int_to_ptr.vmem [resolvable:$true] %s229
          %235 = dma.hbm_to_vmem [thread:$0]  %s228, 256, %s230, %s219, 128, 128, 8
        $region36: #{tpu_custom_call.1} parent=31 // pred_fallthru
          _
      $region32: #{tpu_custom_call.1} parent=5 // pred_fallthru
        _
      %p236 = scmp.le.s32.totalorder 1, %s22
      %p237 = scmp.lt.s32.totalorder %s22, 5
      %p238 = pnand %p236, %p237
      %p239 = pneg %p238
      // Predicated region
      $region37: #{tpu_custom_call.1} parent=5 // pred_check
        _
      $region38: #{tpu_custom_call.1} parent=5 // pred_check_branch
        %241 = sbr.rel (%p238) target = $region40
      $region39: #{tpu_custom_call.1} parent=5 // pred_region
        %s242 = ssub.s32 %s22, 1
        %s243 = sand.u32 %s35, 1
        %s244 = scalar_lea.sflag [#allocation3], %s243
        %s245 = sand.u32 %s35, 1
        %s246 = smul.addr %s245, 16
        %s247 = scalar_lea.vmem [#allocation2], %s246
        // Predicated region
        $region41: #{tpu_custom_call.1} parent=39 // pred_check
          %p248 = pneg %p48
        $region42: #{tpu_custom_call.1} parent=39 // pred_check_branch
          %250 = sbr.rel (%p248) target = $region44
        $region43: #{tpu_custom_call.1} parent=39 // pred_region
          %251 = dma.done %s244, 256
        $region44: #{tpu_custom_call.1} parent=39 // pred_fallthru
          _
        %s252 = sand.u32 %s35, 1
        %s253 = scalar_lea.sflag [#allocation3], %s252
        %s254 = sand.u32 %s35, 1
        %s255 = smul.addr %s254, 16
        %s256 = scalar_lea.vmem [#allocation2], %s255
        %p257 = pneg %p48
        %p258 = pneg %p45
        %p259 = pneg %p69
        %p260 = pneg %p66
        %p261 = pneg %p90
        %p262 = pneg %p87
        %p263 = pneg %p111
        %p264 = pneg %p108
        %p265 = pneg %p132
        %p266 = pneg %p129
        %p267 = pneg %p158
        %p268 = pneg %p155
        %s269 = sand.u32 %s145, 1
        %s270 = scalar_lea.sflag [#allocation4], %s269
        %s271 = sand.u32 %s145, 1
        %s272 = smul.addr %s271, 8
        %s273 = scalar_lea.vmem [#allocation5], %s272
        %p274 = pneg %p184
        %p275 = pneg %p181
        %s276 = sand.u32 %s171, 1
        %s277 = scalar_lea.sflag [#allocation7], %s276
        %s278 = sand.u32 %s171, 1
        %s279 = smul.addr %s278, 2
        %s280 = scalar_lea.vmem [#allocation6], %s279
        %s281 = smul.u32 2, %s27
        %s282 = smul.u32 2, %s27
        %v283 = vld [vmem:[%s247] sm:$0xff]
        %v284 = vld [vmem:[%s247 + $0x8] sm:$0xff]
        %v285 = vld [vmem:[%s1] sm:$0xff]
        %v286 = vld [vmem:[%s1 + $0x8] sm:$0xff]
        %v287 = vld [vmem:[%s1 + $0x10] sm:$0xff]
        %v288 = vld [vmem:[%s1 + $0x18] sm:$0xff]
        %vm289 = vcmask 261120
        %v291 = vsel %vm289, %v283, 0
        %v294 = vsel %vm289, %v284, 0
        %296 = vmatprep.subr.mxu0 0.0
        %297 = vmatpush1.msra.mxu0 %v285
        %298 = vmatprep.subr.mxu0 0.0
        %299 = vmatpush1.msra.mxu0 %v286
        %300 = vmatprep.subr.mxu0 0.0
        %301 = vmatpush1.msra.mxu0 %v287
        %302 = vmatprep.subr.mxu0 0.0
        %303 = vmatpush1.msra.mxu0 %v288
        %304 = vmatprep.subr.mxu0 0.0
        %305 = vmatpush1.msra.mxu0 0.0
        %306 = vmatprep.subr.mxu0 0.0
        %307 = vmatpush1.msra.mxu0 0.0
        %308 = vmatprep.subr.mxu0 0.0
        %309 = vmatpush1.msra.mxu0 0.0
        %310 = vmatprep.subr.mxu0 0.0
        %311 = vmatpush1.msra.mxu0 0.0
        %312 = vmatprep.subr.mxu0 0.0
        %313 = vmatpush1.msra.mxu0 0.0
        %314 = vmatprep.subr.mxu0 0.0
        %315 = vmatpush1.msra.mxu0 0.0
        %316 = vmatprep.subr.mxu0 0.0
        %317 = vmatpush1.msra.mxu0 0.0
        %318 = vmatprep.subr.mxu0 0.0
        %319 = vmatpush1.msra.mxu0 0.0
        %320 = vmatprep.subr.mxu0 0.0
        %321 = vmatpush1.msra.mxu0 0.0
        %322 = vmatprep.subr.mxu0 0.0
        %323 = vmatpush1.msra.mxu0 0.0
        %324 = vmatprep.subr.mxu0 0.0
        %325 = vmatpush1.msra.mxu0 0.0
        %326 = vmatprep.subr.mxu0 0.0
        %327 = vmatpush1.msra.mxu0 0.0
        %328 = vmatprep.subr.mxu0 0.0
        %329 = vmatpush1.msra.mxu0 0.0
        %330 = vmatprep.subr.mxu0 0.0
        %331 = vmatpush1.msra.mxu0 0.0
        %332 = vmatprep.subr.mxu0 0.0
        %333 = vmatpush1.msra.mxu0 0.0
        %334 = vmatprep.subr.mxu0 0.0
        %335 = vmatpush1.msra.mxu0 0.0
        %336 = vmatprep.subr.mxu0 0.0
        %337 = vmatpush1.msra.mxu0 0.0
        %338 = vmatprep.subr.mxu0 0.0
        %339 = vmatpush1.msra.mxu0 0.0
        %340 = vmatprep.subr.mxu0 0.0
        %341 = vmatpush1.msra.mxu0 0.0
        %342 = vmatprep.subr.mxu0 0.0
        %343 = vmatpush1.msra.mxu0 0.0
        %344 = vmatprep.subr.mxu0 0.0
        %345 = vmatpush1.msra.mxu0 0.0
        %346 = vmatprep.subr.mxu0 0.0
        %347 = vmatpush1.msra.mxu0 0.0
        %348 = vmatprep.subr.mxu0 0.0
        %349 = vmatpush1.msra.mxu0 0.0
        %350 = vmatprep.subr.mxu0 0.0
        %351 = vmatpush1.msra.mxu0 0.0
        %352 = vmatprep.subr.mxu0 0.0
        %353 = vmatpush1.msra.mxu0 0.0
        %354 = vmatprep.subr.mxu0 0.0
        %355 = vmatpush1.msra.mxu0 0.0
        %356 = vmatprep.subr.mxu0 0.0
        %357 = vmatpush1.msra.mxu0 0.0
        %358 = vmatprep.subr.mxu0 0.0
        %359 = vmatpush1.msra.mxu0 0.0
        %360 = vmatprep.mubr.f32.mxu0 0.0
        %361 = vmatmul.mubr.f32.gmra.mrb[0].mxu0 %v291
        %v362 = vpop.f32.mrb[0].mxu0
        %v363 = vadd.f32 0.0, %v362
        %v364 = vpop.f32.mrb[0].mxu0
        %365 = vmatprep.mubr.f32.mxu0 0.0
        %366 = vmatmul.mubr.f32.gmra.mrb[0].mxu0 %v294
        %v367 = vpop.f32.mrb[0].mxu0
        %v368 = vadd.f32 0.0, %v367
        %v369 = vpop.f32.mrb[0].mxu0
        %370 = vdwg.mxu0
        %v371 = vtanh.pop %v363
        %v372 = vtanh.pop %v368
        %v373 = vld [vmem:[%s2] sm:$0xff]
        %v374 = vld [vmem:[%s2 + $0x8] sm:$0xff]
        %v375 = vld [vmem:[%s2 + $0x10] sm:$0xff]
        %v376 = vld [vmem:[%s2 + $0x18] sm:$0xff]
        %v378 = vsel %vm289, %v371, 0
        %v381 = vsel %vm289, %v372, 0
        %383 = vmatprep.subr.mxu0 0.0
        %384 = vmatpush1.msra.mxu0 %v373
        %385 = vmatprep.subr.mxu0 0.0
        %386 = vmatpush1.msra.mxu0 %v374
        %387 = vmatprep.subr.mxu0 0.0
        %388 = vmatpush1.msra.mxu0 %v375
        %389 = vmatprep.subr.mxu0 0.0
        %390 = vmatpush1.msra.mxu0 %v376
        %391 = vmatprep.subr.mxu0 0.0
        %392 = vmatpush1.msra.mxu0 0.0
        %393 = vmatprep.subr.mxu0 0.0
        %394 = vmatpush1.msra.mxu0 0.0
        %395 = vmatprep.subr.mxu0 0.0
        %396 = vmatpush1.msra.mxu0 0.0
        %397 = vmatprep.subr.mxu0 0.0
        %398 = vmatpush1.msra.mxu0 0.0
        %399 = vmatprep.subr.mxu0 0.0
        %400 = vmatpush1.msra.mxu0 0.0
        %401 = vmatprep.subr.mxu0 0.0
        %402 = vmatpush1.msra.mxu0 0.0
        %403 = vmatprep.subr.mxu0 0.0
        %404 = vmatpush1.msra.mxu0 0.0
        %405 = vmatprep.subr.mxu0 0.0
        %406 = vmatpush1.msra.mxu0 0.0
        %407 = vmatprep.subr.mxu0 0.0
        %408 = vmatpush1.msra.mxu0 0.0
        %409 = vmatprep.subr.mxu0 0.0
        %410 = vmatpush1.msra.mxu0 0.0
        %411 = vmatprep.subr.mxu0 0.0
        %412 = vmatpush1.msra.mxu0 0.0
        %413 = vmatprep.subr.mxu0 0.0
        %414 = vmatpush1.msra.mxu0 0.0
        %415 = vmatprep.subr.mxu0 0.0
        %416 = vmatpush1.msra.mxu0 0.0
        %417 = vmatprep.subr.mxu0 0.0
        %418 = vmatpush1.msra.mxu0 0.0
        %419 = vmatprep.subr.mxu0 0.0
        %420 = vmatpush1.msra.mxu0 0.0
        %421 = vmatprep.subr.mxu0 0.0
        %422 = vmatpush1.msra.mxu0 0.0
        %423 = vmatprep.subr.mxu0 0.0
        %424 = vmatpush1.msra.mxu0 0.0
        %425 = vmatprep.subr.mxu0 0.0
        %426 = vmatpush1.msra.mxu0 0.0
        %427 = vmatprep.subr.mxu0 0.0
        %428 = vmatpush1.msra.mxu0 0.0
        %429 = vmatprep.subr.mxu0 0.0
        %430 = vmatpush1.msra.mxu0 0.0
        %431 = vmatprep.subr.mxu0 0.0
        %432 = vmatpush1.msra.mxu0 0.0
        %433 = vmatprep.subr.mxu0 0.0
        %434 = vmatpush1.msra.mxu0 0.0
        %435 = vmatprep.subr.mxu0 0.0
        %436 = vmatpush1.msra.mxu0 0.0
        %437 = vmatprep.subr.mxu0 0.0
        %438 = vmatpush1.msra.mxu0 0.0
        %439 = vmatprep.subr.mxu0 0.0
        %440 = vmatpush1.msra.mxu0 0.0
        %441 = vmatprep.subr.mxu0 0.0
        %442 = vmatpush1.msra.mxu0 0.0
        %443 = vmatprep.subr.mxu0 0.0
        %444 = vmatpush1.msra.mxu0 0.0
        %445 = vmatprep.subr.mxu0 0.0
        %446 = vmatpush1.msra.mxu0 0.0
        %447 = vmatprep.mubr.f32.mxu0 0.0
        %448 = vmatmul.mubr.f32.gmra.mrb[0].mxu0 %v378
        %v449 = vpop.f32.mrb[0].mxu0
        %v450 = vadd.f32 0.0, %v449
        %v451 = vpop.f32.mrb[0].mxu0
        %452 = vmatprep.mubr.f32.mxu0 0.0
        %453 = vmatmul.mubr.f32.gmra.mrb[0].mxu0 %v381
        %v454 = vpop.f32.mrb[0].mxu0
        %v455 = vadd.f32 0.0, %v454
        %v456 = vpop.f32.mrb[0].mxu0
        %457 = vdwg.mxu0
        %458 = vxpose.xlu0.b32.start [1/16] %v450, 128
        %459 = vxpose.xlu0.b32.cont [2/16] 0.0, 128
        %460 = vxpose.xlu0.b32.cont [3/16] 0.0, 128
        %461 = vxpose.xlu0.b32.cont [4/16] 0.0, 128
        %462 = vxpose.xlu0.b32.cont [5/16] 0.0, 128
        %463 = vxpose.xlu0.b32.cont [6/16] 0.0, 128
        %464 = vxpose.xlu0.b32.cont [7/16] 0.0, 128
        %465 = vxpose.xlu0.b32.cont [8/16] 0.0, 128
        %466 = vxpose.xlu0.b32.cont [9/16] 0.0, 128
        %467 = vxpose.xlu0.b32.cont [10/16] 0.0, 128
        %468 = vxpose.xlu0.b32.cont [11/16] 0.0, 128
        %469 = vxpose.xlu0.b32.cont [12/16] 0.0, 128
        %470 = vxpose.xlu0.b32.cont [13/16] 0.0, 128
        %471 = vxpose.xlu0.b32.cont [14/16] 0.0, 128
        %472 = vxpose.xlu0.b32.cont [15/16] 0.0, 128
        %473 = vxpose.xlu0.b32.end [16/16] 0.0, 128
        %v474 = vpop.trf.xlu0
        %v475 = vpop.trf.xlu0
        %v476 = vpop.trf.xlu0
        %v477 = vpop.trf.xlu0
        %v478 = vpop.trf.xlu0
        %v479 = vpop.trf.xlu0
        %v480 = vpop.trf.xlu0
        %v481 = vpop.trf.xlu0
        %v482 = vpop.trf.xlu0
        %v483 = vpop.trf.xlu0
        %v484 = vpop.trf.xlu0
        %v485 = vpop.trf.xlu0
        %v486 = vpop.trf.xlu0
        %v487 = vpop.trf.xlu0
        %v488 = vpop.trf.xlu0
        %v489 = vpop.trf.xlu0
        %490 = vxpose.xlu0.b32.start [1/16] %v455, 128
        %491 = vxpose.xlu0.b32.cont [2/16] 0.0, 128
        %492 = vxpose.xlu0.b32.cont [3/16] 0.0, 128
        %493 = vxpose.xlu0.b32.cont [4/16] 0.0, 128
        %494 = vxpose.xlu0.b32.cont [5/16] 0.0, 128
        %495 = vxpose.xlu0.b32.cont [6/16] 0.0, 128
        %496 = vxpose.xlu0.b32.cont [7/16] 0.0, 128
        %497 = vxpose.xlu0.b32.cont [8/16] 0.0, 128
        %498 = vxpose.xlu0.b32.cont [9/16] 0.0, 128
        %499 = vxpose.xlu0.b32.cont [10/16] 0.0, 128
        %500 = vxpose.xlu0.b32.cont [11/16] 0.0, 128
        %501 = vxpose.xlu0.b32.cont [12/16] 0.0, 128
        %502 = vxpose.xlu0.b32.cont [13/16] 0.0, 128
        %503 = vxpose.xlu0.b32.cont [14/16] 0.0, 128
        %504 = vxpose.xlu0.b32.cont [15/16] 0.0, 128
        %505 = vxpose.xlu0.b32.end [16/16] 0.0, 128
        %v506 = vpop.trf.xlu0
        %v507 = vpop.trf.xlu0
        %v508 = vpop.trf.xlu0
        %v509 = vpop.trf.xlu0
        %v510 = vpop.trf.xlu0
        %v511 = vpop.trf.xlu0
        %v512 = vpop.trf.xlu0
        %v513 = vpop.trf.xlu0
        %v514 = vpop.trf.xlu0
        %v515 = vpop.trf.xlu0
        %v516 = vpop.trf.xlu0
        %v517 = vpop.trf.xlu0
        %v518 = vpop.trf.xlu0
        %v519 = vpop.trf.xlu0
        %v520 = vpop.trf.xlu0
        %v521 = vpop.trf.xlu0
        %vm522 = vcmask 60416
        %v523 = vsel %vm522, %v474, -inf
        %524 = vmax.xlane.f32.xlu0 %v523
        %v525 = vpop.xlane.xlu0 %524
        %v526 = vsel %vm522, %v506, -inf
        %527 = vmax.xlane.f32.xlu0 %v526
        %v528 = vpop.xlane.xlu0 %527
        %v529 = vsub.f32 %v474, %v525
        %v530 = vsub.f32 %v506, %v528
        %v531 = vmul.f32 %v529, 1.442695
        %v532 = vpow.pop %v531
        %v533 = vmul.f32 %v530, 1.442695
        %v534 = vpow.pop %v533
        %v535 = vsel %vm522, %v532, 0.0
        %536 = vadd.xlane.f32.xlu0 %v535
        %v537 = vpop.xlane.xlu0 %536
        %v538 = vsel %vm522, %v534, 0.0
        %539 = vadd.xlane.f32.xlu0 %v538
        %v540 = vpop.xlane.xlu0 %539
        %v541 = vrcp.pop %v537
        %v542 = vmul.f32 %v532, %v541
        %v543 = vrcp.pop %v540
        %v544 = vmul.f32 %v534, %v543
        %545 = vst.msk [vmem:[%s273] sm:$0xf] %vm522, %v542
        %546 = vst.msk [vmem:[%s273 + $0x4] sm:$0xf] %vm522, %v544
        %vm547 = vcmask 64512
        %v549 = vsel %vm547, %v542, 0
        %551 = vmatprep.subr.mxu0 0.0
        %552 = vmatpush1.msra.mxu0 %v283
        %553 = vmatprep.subr.mxu0 0.0
        %554 = vmatpush1.msra.mxu0 0.0
        %555 = vmatprep.subr.mxu0 0.0
        %556 = vmatpush1.msra.mxu0 0.0
        %557 = vmatprep.subr.mxu0 0.0
        %558 = vmatpush1.msra.mxu0 0.0
        %559 = vmatprep.subr.mxu0 0.0
        %560 = vmatpush1.msra.mxu0 0.0
        %561 = vmatprep.subr.mxu0 0.0
        %562 = vmatpush1.msra.mxu0 0.0
        %563 = vmatprep.subr.mxu0 0.0
        %564 = vmatpush1.msra.mxu0 0.0
        %565 = vmatprep.subr.mxu0 0.0
        %566 = vmatpush1.msra.mxu0 0.0
        %567 = vmatprep.subr.mxu0 0.0
        %568 = vmatpush1.msra.mxu0 0.0
        %569 = vmatprep.subr.mxu0 0.0
        %570 = vmatpush1.msra.mxu0 0.0
        %571 = vmatprep.subr.mxu0 0.0
        %572 = vmatpush1.msra.mxu0 0.0
        %573 = vmatprep.subr.mxu0 0.0
        %574 = vmatpush1.msra.mxu0 0.0
        %575 = vmatprep.subr.mxu0 0.0
        %576 = vmatpush1.msra.mxu0 0.0
        %577 = vmatprep.subr.mxu0 0.0
        %578 = vmatpush1.msra.mxu0 0.0
        %579 = vmatprep.subr.mxu0 0.0
        %580 = vmatpush1.msra.mxu0 0.0
        %581 = vmatprep.subr.mxu0 0.0
        %582 = vmatpush1.msra.mxu0 0.0
        %583 = vmatprep.subr.mxu0 0.0
        %584 = vmatpush1.msra.mxu0 0.0
        %585 = vmatprep.subr.mxu0 0.0
        %586 = vmatpush1.msra.mxu0 0.0
        %587 = vmatprep.subr.mxu0 0.0
        %588 = vmatpush1.msra.mxu0 0.0
        %589 = vmatprep.subr.mxu0 0.0
        %590 = vmatpush1.msra.mxu0 0.0
        %591 = vmatprep.subr.mxu0 0.0
        %592 = vmatpush1.msra.mxu0 0.0
        %593 = vmatprep.subr.mxu0 0.0
        %594 = vmatpush1.msra.mxu0 0.0
        %595 = vmatprep.subr.mxu0 0.0
        %596 = vmatpush1.msra.mxu0 0.0
        %597 = vmatprep.subr.mxu0 0.0
        %598 = vmatpush1.msra.mxu0 0.0
        %599 = vmatprep.subr.mxu0 0.0
        %600 = vmatpush1.msra.mxu0 0.0
        %601 = vmatprep.subr.mxu0 0.0
        %602 = vmatpush1.msra.mxu0 0.0
        %603 = vmatprep.subr.mxu0 0.0
        %604 = vmatpush1.msra.mxu0 0.0
        %605 = vmatprep.subr.mxu0 0.0
        %606 = vmatpush1.msra.mxu0 0.0
        %607 = vmatprep.subr.mxu0 0.0
        %608 = vmatpush1.msra.mxu0 0.0
        %609 = vmatprep.subr.mxu0 0.0
        %610 = vmatpush1.msra.mxu0 0.0
        %611 = vmatprep.subr.mxu0 0.0
        %612 = vmatpush1.msra.mxu0 0.0
        %613 = vmatprep.subr.mxu0 0.0
        %614 = vmatpush1.msra.mxu0 0.0
        %615 = vmatprep.mubr.f32.mxu0 0.0
        %616 = vmatmul.mubr.f32.gmra.mrb[0].mxu0 %v549
        %v617 = vpop.f32.mrb[0].mxu0
        %v618 = vadd.f32 0.0, %v617
        %v619 = vpop.f32.mrb[0].mxu0
        %620 = vdwg.mxu0
        %v622 = vsel %vm547, %v544, 0
        %624 = vmatprep.subr.mxu0 0.0
        %625 = vmatpush1.msra.mxu0 %v284
        %626 = vmatprep.subr.mxu0 0.0
        %627 = vmatpush1.msra.mxu0 0.0
        %628 = vmatprep.subr.mxu0 0.0
        %629 = vmatpush1.msra.mxu0 0.0
        %630 = vmatprep.subr.mxu0 0.0
        %631 = vmatpush1.msra.mxu0 0.0
        %632 = vmatprep.subr.mxu0 0.0
        %633 = vmatpush1.msra.mxu0 0.0
        %634 = vmatprep.subr.mxu0 0.0
        %635 = vmatpush1.msra.mxu0 0.0
        %636 = vmatprep.subr.mxu0 0.0
        %637 = vmatpush1.msra.mxu0 0.0
        %638 = vmatprep.subr.mxu0 0.0
        %639 = vmatpush1.msra.mxu0 0.0
        %640 = vmatprep.subr.mxu0 0.0
        %641 = vmatpush1.msra.mxu0 0.0
        %642 = vmatprep.subr.mxu0 0.0
        %643 = vmatpush1.msra.mxu0 0.0
        %644 = vmatprep.subr.mxu0 0.0
        %645 = vmatpush1.msra.mxu0 0.0
        %646 = vmatprep.subr.mxu0 0.0
        %647 = vmatpush1.msra.mxu0 0.0
        %648 = vmatprep.subr.mxu0 0.0
        %649 = vmatpush1.msra.mxu0 0.0
        %650 = vmatprep.subr.mxu0 0.0
        %651 = vmatpush1.msra.mxu0 0.0
        %652 = vmatprep.subr.mxu0 0.0
        %653 = vmatpush1.msra.mxu0 0.0
        %654 = vmatprep.subr.mxu0 0.0
        %655 = vmatpush1.msra.mxu0 0.0
        %656 = vmatprep.subr.mxu0 0.0
        %657 = vmatpush1.msra.mxu0 0.0
        %658 = vmatprep.subr.mxu0 0.0
        %659 = vmatpush1.msra.mxu0 0.0
        %660 = vmatprep.subr.mxu0 0.0
        %661 = vmatpush1.msra.mxu0 0.0
        %662 = vmatprep.subr.mxu0 0.0
        %663 = vmatpush1.msra.mxu0 0.0
        %664 = vmatprep.subr.mxu0 0.0
        %665 = vmatpush1.msra.mxu0 0.0
        %666 = vmatprep.subr.mxu0 0.0
        %667 = vmatpush1.msra.mxu0 0.0
        %668 = vmatprep.subr.mxu0 0.0
        %669 = vmatpush1.msra.mxu0 0.0
        %670 = vmatprep.subr.mxu0 0.0
        %671 = vmatpush1.msra.mxu0 0.0
        %672 = vmatprep.subr.mxu0 0.0
        %673 = vmatpush1.msra.mxu0 0.0
        %674 = vmatprep.subr.mxu0 0.0
        %675 = vmatpush1.msra.mxu0 0.0
        %676 = vmatprep.subr.mxu0 0.0
        %677 = vmatpush1.msra.mxu0 0.0
        %678 = vmatprep.subr.mxu0 0.0
        %679 = vmatpush1.msra.mxu0 0.0
        %680 = vmatprep.subr.mxu0 0.0
        %681 = vmatpush1.msra.mxu0 0.0
        %682 = vmatprep.subr.mxu0 0.0
        %683 = vmatpush1.msra.mxu0 0.0
        %684 = vmatprep.subr.mxu0 0.0
        %685 = vmatpush1.msra.mxu0 0.0
        %686 = vmatprep.subr.mxu0 0.0
        %687 = vmatpush1.msra.mxu0 0.0
        %688 = vmatprep.mubr.f32.mxu0 0.0
        %689 = vmatmul.mubr.f32.gmra.mrb[0].mxu0 %v622
        %v690 = vpop.f32.mrb[0].mxu0
        %v691 = vadd.f32 0.0, %v690
        %v692 = vpop.f32.mrb[0].mxu0
        %693 = vdwg.mxu0
        %v694 = vld [vmem:[%s3] sm:$0xf]
        %v695 = vmul.f32 %v618, %v694
        %v696 = vmul.f32 %v691, %v694
        %vm697 = vcmask 257024
        %v698 = vsel %vm697, %v695, 0.0
        %699 = vadd.xlane.f32.xlu0 %v698
        %v700 = vpop.xlane.xlu0 %699
        %v701 = vsel %vm697, %v696, 0.0
        %702 = vadd.xlane.f32.xlu0 %v701
        %v703 = vpop.xlane.xlu0 %702
        %v704 = vmul.f32 %v618, %v618
        %v705 = vmul.f32 %v691, %v691
        %v706 = vsel %vm697, %v704, 0.0
        %707 = vadd.xlane.f32.xlu0 %v706
        %v708 = vpop.xlane.xlu0 %707
        %v709 = vsel %vm697, %v705, 0.0
        %710 = vadd.xlane.f32.xlu0 %v709
        %v711 = vpop.xlane.xlu0 %710
        %v712 = vrsqrt.pop %v708
        %v713 = vmul.f32 %v708, %v712
        %vm714 = vcmp.eq.f32.partialorder %v708, inf
        %v715 = vsel %vm714, %v708, %v713
        %vm716 = vcmp.eq.f32.partialorder %v708, 0.0
        %v717 = vand.u32 %v708, 2147483648
        %v718 = vsel %vm716, %v717, %v715
        %v719 = vrsqrt.pop %v711
        %v720 = vmul.f32 %v711, %v719
        %vm721 = vcmp.eq.f32.partialorder %v711, inf
        %v722 = vsel %vm721, %v711, %v720
        %vm723 = vcmp.eq.f32.partialorder %v711, 0.0
        %v724 = vand.u32 %v711, 2147483648
        %v725 = vsel %vm723, %v724, %v722
        %v726 = vmax.f32 %v718, 1e-08
        %v727 = vmax.f32 %v725, 1e-08
        %v728 = vrcp.pop %v726
        %v729 = vmul.f32 %v700, %v728
        %v730 = vrcp.pop %v727
        %v731 = vmul.f32 %v703, %v730
        %v732 = vld [vmem:[%s4] sm:$0x1]
        %v734 = vlaneseq
        %v735 = vshrl.u32 %v734, 7
        %v736 = vsub.s32 0, %v735
        %v737 = vrot.slane %v732, %v736
        %739 = vbcast.lane.b32.xlu0 %v737, 256
        %v740 = vpop.permute.xlu0 %739
        %v742 = vmul.f32 %v729, %v740
        %v743 = vmul.f32 %v731, %v740
        %v744 = vsub.f32 1.0, %v742
        %v745 = vsub.f32 1.0, %v743
        %v746 = vmul.f32 %v744, 0.5
        %v747 = vmul.f32 %v745, 0.5
        %750 = vset.pattern.permute.xlu0 0
        %751 = vperm.xlu0 %750, %v746
        %v752 = vpop.permute.xlu0 %751
        %753 = vset.pattern.permute.xlu0 0
        %754 = vperm.xlu0 %753, %v747
        %v755 = vpop.permute.xlu0 %754
        %v756 = vlaneseq
        %v757 = vand.u32 %v756, 127
        %v758 = vlaneseq
        %v759 = vshrl.u32 %v758, 7
        %v760 = vsub.s32 %v757, %v759
        %v761 = vrot.slane %v752, %v760
        %v762 = vlaneseq
        %v763 = vshrl.u32 %v762, 7
        %v764 = vsub.s32 %v757, %v763
        %v765 = vrot.slane %v755, %v764
        %vm766 = vcmask 1041409
        %v767 = vsel %vm766, %v765, %v761
        %vm769 = vcmask 25600
        %770 = vst.msk [vmem:[%s280] sm:$0x3] %vm769, %v767
        %s771 = sand.u32 %s145, 1
        %s772 = scalar_lea.sflag [#allocation4], %s771
        %s773 = sand.u32 %s145, 1
        %s774 = smul.addr %s773, 8
        %s775 = scalar_lea.vmem [#allocation5], %s774
        %s776 = sand.u32 %s171, 1
        %s777 = scalar_lea.sflag [#allocation7], %s776
        %s778 = sand.u32 %s171, 1
        %s779 = smul.addr %s778, 2
        %s780 = scalar_lea.vmem [#allocation6], %s779
        // Predicated region
        $region45: #{tpu_custom_call.1} parent=39 // pred_check
          %p781 = pneg %p155
        $region46: #{tpu_custom_call.1} parent=39 // pred_check_branch
          %783 = sbr.rel (%p781) target = $region48
        $region47: #{tpu_custom_call.1} parent=39 // pred_region
          %s784 = smul.u32 2, %s27
          %s786 = ssub.s32 128, 128
          %787 = vsyncadd %s772, %s786
          %s788 = smul.addr %s784, 64
          %s789 = scalar_lea.hbm %s5, %s788
          %s790 = sshll.u32 %s775, 4
          %s791 = int_to_ptr.vmem [resolvable:$true] %s790
          %796 = dma.vmem_to_hbm [thread:$0]  %s791, 128, %s789, %s772, 64, 64, 4
        $region48: #{tpu_custom_call.1} parent=39 // pred_fallthru
          _
        // Predicated region
        $region49: #{tpu_custom_call.1} parent=39 // pred_check
          %p797 = pneg %p181
        $region50: #{tpu_custom_call.1} parent=39 // pred_check_branch
          %799 = sbr.rel (%p797) target = $region52
        $region51: #{tpu_custom_call.1} parent=39 // pred_region
          %s801 = ssub.s32 32, 32
          %802 = vsyncadd %s777, %s801
          %s803 = smul.addr %s27, 32
          %s804 = scalar_lea.hbm %s6, %s803
          %s806 = sshll.u32 %s780, 4
          %s807 = int_to_ptr.vmem [resolvable:$true] %s806
          %809 = dma.vmem_to_hbm [thread:$0]  %s807, 32, %s804, %s777
        $region52: #{tpu_custom_call.1} parent=39 // pred_fallthru
          _
      $region40: #{tpu_custom_call.1} parent=5 // pred_fallthru
        _
      %p810 = scmp.le.s32.totalorder 2, %s22
      // Predicated region
      $region53: #{tpu_custom_call.1} parent=5 // pred_check
        %p811 = pneg %p810
      $region54: #{tpu_custom_call.1} parent=5 // pred_check_branch
        %813 = sbr.rel (%p811) target = $region56
      $region55: #{tpu_custom_call.1} parent=5 // pred_region
        %s814 = ssub.s32 %s22, 2
        // Predicated region
        $region57: #{tpu_custom_call.1} parent=55 // pred_check
          %p815 = pneg %p161
        $region58: #{tpu_custom_call.1} parent=55 // pred_check_branch
          %817 = sbr.rel (%p815) target = $region60
        $region59: #{tpu_custom_call.1} parent=55 // pred_region
          %s818 = sand.u32 %s146, 1
          %s819 = scalar_lea.sflag [#allocation4], %s818
          %s820 = sand.u32 %s146, 1
          %s821 = smul.addr %s820, 8
          %s822 = scalar_lea.vmem [#allocation5], %s821
          %823 = dma.done %s819, 128
        $region60: #{tpu_custom_call.1} parent=55 // pred_fallthru
          _
        // Predicated region
        $region61: #{tpu_custom_call.1} parent=55 // pred_check
          %p824 = pneg %p187
        $region62: #{tpu_custom_call.1} parent=55 // pred_check_branch
          %826 = sbr.rel (%p824) target = $region64
        $region63: #{tpu_custom_call.1} parent=55 // pred_region
          %s827 = sand.u32 %s172, 1
          %s828 = scalar_lea.sflag [#allocation7], %s827
          %s829 = sand.u32 %s172, 1
          %s830 = smul.addr %s829, 2
          %s831 = scalar_lea.vmem [#allocation6], %s830
          %832 = dma.done %s828, 32
        $region64: #{tpu_custom_call.1} parent=55 // pred_fallthru
          _
      $region56: #{tpu_custom_call.1} parent=5 // pred_fallthru
        _
    $region6: #{tpu_custom_call.1} parent=1 // loop_footer
      %s26 = sadd.s32 1, %s22
    $region7: #{tpu_custom_call.1} parent=1 // loop_footer_branch
      %21 = sbr.rel target = $region3
    $region8: #{tpu_custom_call.1} parent=1 // loop_exit
      _
    %833 = vsyncpa [#allocation3], 1
    %s834 = scalar_lea.sflag [#allocation3], 1
    %835 = vsyncpa %s834, 1
    %836 = vsyncpa [#allocation4], 1
    %s837 = scalar_lea.sflag [#allocation4], 1
    %838 = vsyncpa %s837, 1
    %839 = vsyncpa [#allocation7], 1
    %s840 = scalar_lea.sflag [#allocation7], 1
    %841 = vsyncpa %s840, 1

</llo_original>
